<compile_context>
chip_gen: v7x
topology: tpu7x:2x2x1
jax: 0.10.0
libtpu: 0.0.40
codegen_flags: <defaults>
</compile_context>

<pallas_src>
import math

import jax
import jax.numpy as jnp
from jax.experimental import pallas as pl
from jax.experimental.pallas import tpu as pltpu


# ----------------------------- Pallas kernel -----------------------------

def _add_pe_kernel(x_ref, pe_ref, o_ref):
    # x_ref: (rows, S*D), pe_ref: (1, S*D) broadcast along the sublane axis.
    # Single lane-dense VPU add; the entire forward pass is this one op.
    o_ref[...] = x_ref[...] + pe_ref[...]


# ----------------------------- wrapper -----------------------------------

def add_positional_encoding(x, pe, *, vmem_budget_bytes=8 * 1024 * 1024):
    """x: (B, S, D) float array; pe: (max_len, D) sinusoidal table."""
    B, S, D = x.shape
    N = S * D
    itemsize = jnp.dtype(x.dtype).itemsize

    # Slice the table to the current sequence length and flatten: (1, S*D).
    pe_row = jax.lax.slice_in_dim(pe, 0, S, axis=0).astype(x.dtype).reshape(1, N)
    x2 = x.reshape(B, N)                       # free reshape, lane-dense last axis

    # Fast path: everything (x, pe, out) fits comfortably in VMEM -> one
    # single whole-array invocation, no grid, no pipeline overhead.
    working_set = (2 * B * N + N) * itemsize
    if working_set <= vmem_budget_bytes:
        out = pl.pallas_call(
            _add_pe_kernel,
            out_shape=jax.ShapeDtypeStruct((B, N), x2.dtype),
            in_specs=[pl.BlockSpec(memory_space=pltpu.MemorySpace.VMEM),
                      pl.BlockSpec(memory_space=pltpu.MemorySpace.VMEM)],
            out_specs=pl.BlockSpec(memory_space=pltpu.MemorySpace.VMEM),
        )(x2, pe_row)
        return out.reshape(B, S, D)

    # Large-batch fallback: 1-D grid over row tiles. The PE row block maps to
    # the same (0, 0) block every step, so it stays resident in VMEM.
    row_bytes = N * itemsize
    tb = max(8, ((vmem_budget_bytes // (3 * row_bytes)) // 8) * 8)  # multiple of 8
    tb = min(tb, pl.cdiv(B, 8) * 8)
    b_pad = pl.cdiv(B, tb) * tb
    if b_pad != B:
        x2 = jnp.pad(x2, ((0, b_pad - B), (0, 0)))

    out = pl.pallas_call(
        _add_pe_kernel,
        out_shape=jax.ShapeDtypeStruct((b_pad, N), x2.dtype),
        grid=(b_pad // tb,),
        in_specs=[pl.BlockSpec((tb, N), lambda i: (i, 0)),
                  pl.BlockSpec((1, N), lambda i: (0, 0))],
        out_specs=pl.BlockSpec((tb, N), lambda i: (i, 0)),
        compiler_params=pltpu.CompilerParams(
            dimension_semantics=("parallel",)),
    )(x2, pe_row)
    return out[:B].reshape(B, S, D)


# ------------------ buffer init (torch __init__ equivalent) ---------------

def make_sinusoidal_pe(max_len, d_model, dtype=jnp.float32):
    """Matches the torch buffer: pe[:,0::2]=sin(pos*div), pe[:,1::2]=cos(pos*div)."""
    position = jnp.arange(max_len, dtype=jnp.float32)[:, None]            # (L, 1)
    div_term = jnp.exp(jnp.arange(0, d_model, 2, dtype=jnp.float32)
                       * (-math.log(10000.0) / d_model))                  # (D/2,)
    angles = position * div_term[None, :]                                 # (L, D/2)
    pe = jnp.zeros((max_len, d_model), jnp.float32)
    pe = pe.at[:, 0::2].set(jnp.sin(angles))
    pe = pe.at[:, 1::2].set(jnp.cos(angles))
    return pe.astype(dtype)


# ----------------------------- main ---------------------------------------

if __name__ == "__main__":
    key = jax.random.PRNGKey(0)
    B, S, D = 2, 8, 32          # batch, seq, d_model (small shapes per spec)
    MAX_LEN = 5000

    x = jax.random.normal(key, (B, S, D), dtype=jnp.float32)
    pe = make_sinusoidal_pe(MAX_LEN, D)

    out = add_positional_encoding(x, pe)
    out = jax.block_until_ready(out)

    # Reference check (pure JAX, mirrors the PyTorch forward exactly).
    ref = x + pe[None, :S, :]
    assert out.shape == (B, S, D)
    assert bool(jnp.allclose(out, ref, atol=1e-6, rtol=1e-6))
    assert bool(jnp.all(jnp.isfinite(out)))
    print("KERNEL_OK")
</pallas_src>

<mosaic_0001>
module attributes {stable_mosaic.version = 11 : i64} {
  func.func @_add_pe_kernel(%arg0: memref<2x256xf32, #tpu.memory_space<vmem>>, %arg1: memref<1x256xf32, #tpu.memory_space<vmem>>, %arg2: memref<2x256xf32, #tpu.memory_space<vmem>>) attributes {dimension_semantics = [], scalar_prefetch = 0 : i64, scratch_operands = 0 : i64, tpu.core_type = #tpu.core_type<tc>} {
    %c0 = arith.constant 0 : index
    %c0_0 = arith.constant 0 : index
    %0 = vector.load %arg0[%c0, %c0_0] : memref<2x256xf32, #tpu.memory_space<vmem>>, vector<2x256xf32>
    %c0_1 = arith.constant 0 : index
    %c0_2 = arith.constant 0 : index
    %1 = vector.load %arg1[%c0_1, %c0_2] : memref<1x256xf32, #tpu.memory_space<vmem>>, vector<1x256xf32>
    %2 = vector.broadcast %1 : vector<1x256xf32> to vector<2x256xf32>
    %3 = arith.addf %0, %2 : vector<2x256xf32>
    %c0_3 = arith.constant 0 : index
    %c0_4 = arith.constant 0 : index
    %4 = vector.load %arg2[%c0_3, %c0_4] : memref<2x256xf32, #tpu.memory_space<vmem>>, vector<2x256xf32>
    tpu.vector_store %arg2[%c0_3, %c0_4], %3 {strides = array<i32>} : memref<2x256xf32, #tpu.memory_space<vmem>>, vector<2x256xf32>,
    return
  }
}

</mosaic_0001>

<llo_original>
// kernel: tpu_custom_call.1
$region0: #{tpu_custom_call.1}
  #allocation0 [shape = 'u32[]', space=smem, size = 0x4, offset = 0x4, fixed_abs, tag = 'smem constant byte address 0x4 - core index']
  #allocation1 [shape = 'u32[144,128]{1,0:T(1,128)}', space=vmem, size = 0x12000, scoped, tag = 'internal scratch']
  %s0 = inlined_call_operand.hbm [shape: f32[2,256], index: 0, kind: input, shape index: {}]
  %s1 = inlined_call_operand.vmem [shape: f32[1,256], index: 1, kind: input, shape index: {}]
  %s2 = inlined_call_operand.hbm [shape: f32[2,256], index: 2, kind: output, shape index: {}]
  %s3 = sld [smem:[#allocation0]]
  $region22: #{tpu_custom_call.1} parent=0
    _
  %s5 = ssub.s32 1, %s3
  %s6 = scalar_select 0, %s5, %s3
  $region1: #{tpu_custom_call.1} parent=0
    #allocation2 [shape = 'u8[2048]{0}', space=vmem, size = 0x800, scoped, tag = 'input window, operand 0, single buffered']
    #allocation3 [shape = 's32[1]{0}', space=sflag, size = 0x4, scoped, tag = 'scoped memory for tpu_custom_call.1']
    #allocation4 [shape = 's32[1]{0}', space=sflag, size = 0x4, scoped, tag = 'scoped memory for tpu_custom_call.1']
    #allocation5 [shape = 'u8[2048]{0}', space=vmem, size = 0x800, scoped, tag = 'output window, operand 0, single buffered']
    %7 = vsyncpa [#allocation3], 0
    %8 = vsyncpa [#allocation4], 0
    // Predicated region
    $region2: #{tpu_custom_call.1} parent=1 // pred_check
      _
    $region3: #{tpu_custom_call.1} parent=1 // pred_check_branch
      %10 = sbr.rel (0) target = $region5
    $region4: #{tpu_custom_call.1} parent=1 // pred_region
      %s12 = ssub.s32 64, 64
      %13 = vsyncadd [#allocation3], %s12
      %s15 = sshll.u32 [#allocation2], 4
      %s16 = int_to_ptr.vmem [resolvable:$true] %s15
      %18 = dma.hbm_to_vmem [thread:$0]  %s0, 64, %s16, [#allocation3]
    $region5: #{tpu_custom_call.1} parent=1 // pred_fallthru
      _
    // Predicated region
    $region6: #{tpu_custom_call.1} parent=1 // pred_check
      _
    $region7: #{tpu_custom_call.1} parent=1 // pred_check_branch
      %20 = sbr.rel (0) target = $region9
    $region8: #{tpu_custom_call.1} parent=1 // pred_region
      _
    $region9: #{tpu_custom_call.1} parent=1 // pred_fallthru
      _
    // Predicated region
    $region10: #{tpu_custom_call.1} parent=1 // pred_check
      _
    $region11: #{tpu_custom_call.1} parent=1 // pred_check_branch
      %22 = sbr.rel (0) target = $region13
    $region12: #{tpu_custom_call.1} parent=1 // pred_region
      %23 = dma.done [#allocation3], 64
    $region13: #{tpu_custom_call.1} parent=1 // pred_fallthru
      _
    %v24 = vld [vmem:[#allocation2] sm:$0xf]
    %v25 = vld [vmem:[%s1] sm:$0x3]
    %v27 = vlaneseq
    %v28 = vshrl.u32 %v27, 7
    %v29 = vsub.s32 0, %v28
    %v30 = vrot.slane %v25, %v29
    %v31 = vlaneseq
    %v32 = vshrl.u32 %v31, 7
    %v33 = vsub.s32 1, %v32
    %v34 = vrot.slane %v25, %v33
    %v35 = vcombine.low %v30, %v34
    %v37 = vunpack.c.l.s4 1983009808
    %v38 = vunpack.c.0.s8 %v37
    %v39 = vlaneseq
    %v40 = vshrl.u32 %v39, 7
    %v41 = vsub.s32 %v38, %v40
    %v42 = vrot.slane %v35, %v41
    %v44 = vadd.f32 %v24, %v42
    %45 = vst [vmem:[#allocation5] sm:$0xf] %v44
    // Predicated region
    $region14: #{tpu_custom_call.1} parent=1 // pred_check
      _
    $region15: #{tpu_custom_call.1} parent=1 // pred_check_branch
      %47 = sbr.rel (0) target = $region17
    $region16: #{tpu_custom_call.1} parent=1 // pred_region
      %s49 = ssub.s32 64, 64
      %50 = vsyncadd [#allocation4], %s49
      %s52 = sshll.u32 [#allocation5], 4
      %s53 = int_to_ptr.vmem [resolvable:$true] %s52
      %55 = dma.vmem_to_hbm [thread:$0]  %s53, 64, %s2, [#allocation4]
    $region17: #{tpu_custom_call.1} parent=1 // pred_fallthru
      _
    // Predicated region
    $region18: #{tpu_custom_call.1} parent=1 // pred_check
      _
    $region19: #{tpu_custom_call.1} parent=1 // pred_check_branch
      %57 = sbr.rel (0) target = $region21
    $region20: #{tpu_custom_call.1} parent=1 // pred_region
      %58 = dma.done [#allocation4], 64
    $region21: #{tpu_custom_call.1} parent=1 // pred_fallthru
      _
    %59 = vsyncpa [#allocation3], 1
    %60 = vsyncpa [#allocation4], 1

</llo_original>
